<compile_context>
chip_gen: v6e
topology: v6e:2x2x1
jax: 0.10.0
libtpu: 0.0.40
codegen_flags: <defaults>
</compile_context>

<pallas_src>
import functools
import math

import jax
import jax.numpy as jnp
from jax.experimental import pallas as pl
from jax.experimental.pallas import tpu as pltpu


def _round_up(n, m):
    return (n + m - 1) // m * m


def _default_block_b(B):
    # Enough grid steps for DMA/compute overlap (and >=4 per TC under v7x megacore when B is
    # large), tile capped at 1024 rows, floor 128 so per-step overhead stays amortized.
    return min(1024, max(128, _round_up(-(-B // 8), 8)))


def _actor_kernel(x_ref, w1_ref, b1_ref, w2_ref, b2_ref, w3_ref, b3_ref, mean_ref,
                  *, action_dim, bf16_tanh):
    # One batch tile per grid step: 3 MXU matmuls with f32 accumulation; bias adds in f32;
    # tanh epilogue in bf16 (v6e/v7x EUP path) or f32; un-padded (tb, action_dim) store.
    mm_dtype = w1_ref.dtype
    eps_dtype = mm_dtype if bf16_tanh else jnp.float32

    x = x_ref[...].astype(mm_dtype)  # cast in VMEM -> no extra HBM traffic for x
    z1 = jnp.dot(x, w1_ref[...], preferred_element_type=jnp.float32) + b1_ref[...]
    h1 = jnp.tanh(z1.astype(eps_dtype)).astype(mm_dtype)
    z2 = jnp.dot(h1, w2_ref[...], preferred_element_type=jnp.float32) + b2_ref[...]
    h2 = jnp.tanh(z2.astype(eps_dtype)).astype(mm_dtype)
    mean = jnp.dot(h2, w3_ref[...], preferred_element_type=jnp.float32) + b3_ref[...]
    # Static slice of the padded compute tile -> un-padded output block (masked lane store is
    # pure slack here; avoids 16x-padded HBM writeback + a wrapper slice pass).
    mean_ref[...] = mean[:, :action_dim].astype(mean_ref.dtype)


def prepare_actor_params(params, use_bf16=True):
    """Pad + cast the (tiny) weights ONCE, outside the jitted forward.

    Returns (w1p, b1p, w2p, b2p, w3p, b3p, std) with weights (in, out) padded to lane-dense
    widths in bf16 (or f32), biases (1, padded) f32, and std = exp(log_std) precomputed.
    """
    w1, b1, w2, b2, w3, b3, log_std = params
    hidden = w1.shape[1]
    action_dim = w3.shape[1]
    HP = _round_up(hidden, 128)      # lane-dense hidden width (compute tiles only)
    AP = _round_up(action_dim, 128)  # lane-dense final matmul width (compute tiles only)
    mm_dtype = jnp.bfloat16 if use_bf16 else jnp.float32

    w1p = jnp.pad(w1, ((0, 0), (0, HP - hidden))).astype(mm_dtype)
    w2p = jnp.pad(w2, ((0, HP - hidden), (0, HP - hidden))).astype(mm_dtype)
    w3p = jnp.pad(w3, ((0, HP - hidden), (0, AP - action_dim))).astype(mm_dtype)
    b1p = jnp.pad(b1, (0, HP - hidden)).reshape(1, HP).astype(jnp.float32)
    b2p = jnp.pad(b2, (0, HP - hidden)).reshape(1, HP).astype(jnp.float32)
    b3p = jnp.pad(b3, (0, AP - action_dim)).reshape(1, AP).astype(jnp.float32)
    std = jnp.exp(log_std)  # batch-independent: computed once here, passed through forward
    return (w1p, b1p, w2p, b2p, w3p, b3p, std)


@functools.partial(jax.jit, static_argnames=("block_b", "bf16_tanh"))
def actor_forward(x, prepared, block_b=None, bf16_tanh=True):
    """x: [B, state_dim] f32; prepared from prepare_actor_params.
    Returns (mean [B, action_dim] f32, std [action_dim] f32)."""
    w1p, b1p, w2p, b2p, w3p, b3p, std = prepared
    B, state_dim = x.shape
    HP = w1p.shape[1]
    AP = w3p.shape[1]
    action_dim = std.shape[0]

    if block_b is None:
        block_b = _default_block_b(B)
    # Full batch as one tile if it fits, else block_b rows (forced to a multiple of 8).
    tb = B if B <= block_b else max(8, (block_b // 8) * 8)
    grid = (pl.cdiv(B, tb),)

    const = lambda i: (0, 0)  # weights/biases: same block every grid step (no re-DMA)
    in_specs = [
        pl.BlockSpec((tb, state_dim), lambda i: (i, 0)),  # x tile marches over the batch
        pl.BlockSpec((state_dim, HP), const),
        pl.BlockSpec((1, HP), const),
        pl.BlockSpec((HP, HP), const),
        pl.BlockSpec((1, HP), const),
        pl.BlockSpec((HP, AP), const),
        pl.BlockSpec((1, AP), const),
    ]
    # Un-padded output: last dim equals the full array dim (action_dim), so no (8,128) issue.
    out_specs = pl.BlockSpec((tb, action_dim), lambda i: (i, 0))

    kernel = functools.partial(_actor_kernel, action_dim=action_dim, bf16_tanh=bf16_tanh)
    mean = pl.pallas_call(
        kernel,
        out_shape=jax.ShapeDtypeStruct((B, action_dim), jnp.float32),
        grid=grid,
        in_specs=in_specs,
        out_specs=out_specs,
        compiler_params=pltpu.CompilerParams(
            dimension_semantics=("parallel",),  # megacore sharding of batch tiles on v7x
        ),
    )(x, w1p, b1p, w2p, b2p, w3p, b3p)
    return mean, std


def init_actor_params(key, state_dim, action_dim, hidden_size=64):
    """Deterministic init matching nn.Linear default (U[-1/sqrt(fan_in), 1/sqrt(fan_in)]).
    Weights stored as (in, out) = W^T of PyTorch; biases as (out,); log_std as (action_dim,)."""
    ks = jax.random.split(key, 6)

    def linear(kw, kb, fan_in, fan_out):
        bound = 1.0 / math.sqrt(fan_in)
        w = jax.random.uniform(kw, (fan_in, fan_out), jnp.float32, -bound, bound)
        b = jax.random.uniform(kb, (fan_out,), jnp.float32, -bound, bound)
        return w, b

    w1, b1 = linear(ks[0], ks[1], state_dim, hidden_size)
    w2, b2 = linear(ks[2], ks[3], hidden_size, hidden_size)
    w3, b3 = linear(ks[4], ks[5], hidden_size, action_dim)
    log_std = jnp.zeros((action_dim,), jnp.float32)  # nn.Parameter(torch.zeros(action_dim))
    return (w1, b1, w2, b2, w3, b3, log_std)


def _ref_f32(x, params):
    w1, b1, w2, b2, w3, b3, _ = params
    h = jnp.tanh(x @ w1 + b1)
    h = jnp.tanh(h @ w2 + b2)
    return h @ w3 + b3


def _ref_matched(x, params, bf16_tanh=True):
    # Same numerics as the kernel: bf16 operands, f32 MXU accumulation, bf16/f32 tanh epilogue.
    w1, b1, w2, b2, w3, b3, _ = params
    bf = jnp.bfloat16

    def lin(h, w, b):
        return jnp.dot(h.astype(bf), w.astype(bf), preferred_element_type=jnp.float32) + b

    z1 = lin(x, w1, b1)
    h1 = jnp.tanh(z1.astype(bf) if bf16_tanh else z1)
    z2 = lin(h1, w2, b2)
    h2 = jnp.tanh(z2.astype(bf) if bf16_tanh else z2)
    return lin(h2, w3, b3)


if __name__ == "__main__":
    key = jax.random.PRNGKey(0)
    k_params, k_x = jax.random.split(key)

    batch, state_dim, action_dim, hidden = 64, 16, 8, 64
    params = init_actor_params(k_params, state_dim, action_dim, hidden)
    prepared = prepare_actor_params(params)  # pad/cast once, outside the jitted forward
    x = jax.random.normal(k_x, (batch, state_dim), jnp.float32)

    # Test 1: single-tile path (B <= block_b).
    mean, std = actor_forward(x, prepared)
    jax.block_until_ready((mean, std))

    mean_matched = _ref_matched(x, params)
    mean_f32 = _ref_f32(x, params)
    std_ref = jnp.exp(params[-1])

    assert mean.shape == (batch, action_dim) and std.shape == (action_dim,)
    assert jnp.allclose(mean, mean_matched, atol=3e-2, rtol=3e-2), "mean mismatch (matched ref)"
    assert jnp.allclose(mean, mean_f32, atol=5e-2, rtol=5e-2), "mean mismatch (f32 ref)"
    assert jnp.allclose(std, std_ref, atol=1e-6), "std mismatch"

    # Test 2: multi-tile path with a partial last tile (B=80, block_b=32 -> grid=3, masked tail).
    x2 = jax.random.normal(jax.random.PRNGKey(1), (80, state_dim), jnp.float32)
    mean2, _ = actor_forward(x2, prepared, block_b=32)
    jax.block_until_ready(mean2)
    assert mean2.shape == (80, action_dim)
    assert jnp.allclose(mean2, _ref_f32(x2, params), atol=5e-2, rtol=5e-2), "partial-tile mismatch"

    # TODO(synk): get_dist / act (Normal sampling, log_prob) are host-side distribution logic,
    # not part of the module's forward pass, and are intentionally not kernelized.
    print("KERNEL_OK")
</pallas_src>

<mosaic_0001>
module attributes {stable_mosaic.version = 11 : i64} {
  func.func @_actor_kernel(%arg0: i32, %arg1: memref<64x16xf32, #tpu.memory_space<vmem>>, %arg2: memref<16x128xbf16, #tpu.memory_space<vmem>>, %arg3: memref<1x128xf32, #tpu.memory_space<vmem>>, %arg4: memref<128x128xbf16, #tpu.memory_space<vmem>>, %arg5: memref<1x128xf32, #tpu.memory_space<vmem>>, %arg6: memref<128x128xbf16, #tpu.memory_space<vmem>>, %arg7: memref<1x128xf32, #tpu.memory_space<vmem>>, %arg8: memref<64x8xf32, #tpu.memory_space<vmem>>) attributes {dimension_semantics = [#tpu.dimension_semantics<parallel>], iteration_bounds = array<i64: 1>, scalar_prefetch = 0 : i64, scratch_operands = 0 : i64, tpu.core_type = #tpu.core_type<tc>, window_params = [{transform_indices = @transform_0, window_bounds = array<i64: 64, 16>}, {pipeline_mode = #tpu.pipeline_mode<synchronous>, transform_indices = @transform_1, window_bounds = array<i64: 16, 128>}, {pipeline_mode = #tpu.pipeline_mode<synchronous>, transform_indices = @transform_2, window_bounds = array<i64: 1, 128>}, {pipeline_mode = #tpu.pipeline_mode<synchronous>, transform_indices = @transform_3, window_bounds = array<i64: 128, 128>}, {pipeline_mode = #tpu.pipeline_mode<synchronous>, transform_indices = @transform_4, window_bounds = array<i64: 1, 128>}, {pipeline_mode = #tpu.pipeline_mode<synchronous>, transform_indices = @transform_5, window_bounds = array<i64: 128, 128>}, {pipeline_mode = #tpu.pipeline_mode<synchronous>, transform_indices = @transform_6, window_bounds = array<i64: 1, 128>}, {transform_indices = @transform_7, window_bounds = array<i64: 64, 8>}]} {
    %c0 = arith.constant 0 : index
    %c0_0 = arith.constant 0 : index
    %0 = vector.load %arg1[%c0, %c0_0] : memref<64x16xf32, #tpu.memory_space<vmem>>, vector<64x16xf32>
    %1 = arith.truncf %0 : vector<64x16xf32> to vector<64x16xbf16>
    %c0_1 = arith.constant 0 : index
    %c0_2 = arith.constant 0 : index
    %2 = vector.load %arg2[%c0_1, %c0_2] : memref<16x128xbf16, #tpu.memory_space<vmem>>, vector<16x128xbf16>
    %cst = arith.constant dense<0.000000e+00> : vector<64x128xf32>
    %3 = tpu.matmul %1, %2, %cst {dimension_numbers = #tpu.dot_dimension_numbers<[1], [0], [0], [1], [0, 0, 1, 1], [], []>} : vector<64x16xbf16>, vector<16x128xbf16>, vector<64x128xf32> -> vector<64x128xf32>
    %c0_3 = arith.constant 0 : index
    %c0_4 = arith.constant 0 : index
    %4 = vector.load %arg3[%c0_3, %c0_4] : memref<1x128xf32, #tpu.memory_space<vmem>>, vector<1x128xf32>
    %5 = vector.broadcast %4 : vector<1x128xf32> to vector<64x128xf32>
    %6 = arith.addf %3, %5 : vector<64x128xf32>
    %7 = arith.truncf %6 : vector<64x128xf32> to vector<64x128xbf16>
    %8 = math.tanh %7 : vector<64x128xbf16>
    %c0_5 = arith.constant 0 : index
    %c0_6 = arith.constant 0 : index
    %9 = vector.load %arg4[%c0_5, %c0_6] : memref<128x128xbf16, #tpu.memory_space<vmem>>, vector<128x128xbf16>
    %cst_7 = arith.constant dense<0.000000e+00> : vector<64x128xf32>
    %10 = tpu.matmul %8, %9, %cst_7 {dimension_numbers = #tpu.dot_dimension_numbers<[1], [0], [0], [1], [0, 0, 1, 1], [], []>} : vector<64x128xbf16>, vector<128x128xbf16>, vector<64x128xf32> -> vector<64x128xf32>
    %c0_8 = arith.constant 0 : index
    %c0_9 = arith.constant 0 : index
    %11 = vector.load %arg5[%c0_8, %c0_9] : memref<1x128xf32, #tpu.memory_space<vmem>>, vector<1x128xf32>
    %12 = vector.broadcast %11 : vector<1x128xf32> to vector<64x128xf32>
    %13 = arith.addf %10, %12 : vector<64x128xf32>
    %14 = arith.truncf %13 : vector<64x128xf32> to vector<64x128xbf16>
    %15 = math.tanh %14 : vector<64x128xbf16>
    %c0_10 = arith.constant 0 : index
    %c0_11 = arith.constant 0 : index
    %16 = vector.load %arg6[%c0_10, %c0_11] : memref<128x128xbf16, #tpu.memory_space<vmem>>, vector<128x128xbf16>
    %cst_12 = arith.constant dense<0.000000e+00> : vector<64x128xf32>
    %17 = tpu.matmul %15, %16, %cst_12 {dimension_numbers = #tpu.dot_dimension_numbers<[1], [0], [0], [1], [0, 0, 1, 1], [], []>} : vector<64x128xbf16>, vector<128x128xbf16>, vector<64x128xf32> -> vector<64x128xf32>
    %c0_13 = arith.constant 0 : index
    %c0_14 = arith.constant 0 : index
    %18 = vector.load %arg7[%c0_13, %c0_14] : memref<1x128xf32, #tpu.memory_space<vmem>>, vector<1x128xf32>
    %19 = vector.broadcast %18 : vector<1x128xf32> to vector<64x128xf32>
    %20 = arith.addf %17, %19 : vector<64x128xf32>
    %21 = vector.extract_strided_slice %20 {offsets = [0, 0], sizes = [64, 8], strides = [1, 1]} : vector<64x128xf32> to vector<64x8xf32>
    %c0_15 = arith.constant 0 : index
    %c0_16 = arith.constant 0 : index
    %22 = vector.load %arg8[%c0_15, %c0_16] : memref<64x8xf32, #tpu.memory_space<vmem>>, vector<64x8xf32>
    tpu.vector_store %arg8[%c0_15, %c0_16], %21 {strides = array<i32>} : memref<64x8xf32, #tpu.memory_space<vmem>>, vector<64x8xf32>,
    return
  }
  func.func @transform_0(%arg0: i32) -> (i32, i32) {
    %c0_i32 = arith.constant 0 : i32
    %c0_i32_0 = arith.constant 0 : i32
    return %arg0, %c0_i32 : i32, i32
  }
  func.func @transform_1(%arg0: i32) -> (i32, i32) {
    %c0_i32 = arith.constant 0 : i32
    %c0_i32_0 = arith.constant 0 : i32
    %c0_i32_1 = arith.constant 0 : i32
    return %c0_i32, %c0_i32_0 : i32, i32
  }
  func.func @transform_2(%arg0: i32) -> (i32, i32) {
    %c0_i32 = arith.constant 0 : i32
    %c0_i32_0 = arith.constant 0 : i32
    %c0_i32_1 = arith.constant 0 : i32
    return %c0_i32, %c0_i32_0 : i32, i32
  }
  func.func @transform_3(%arg0: i32) -> (i32, i32) {
    %c0_i32 = arith.constant 0 : i32
    %c0_i32_0 = arith.constant 0 : i32
    %c0_i32_1 = arith.constant 0 : i32
    return %c0_i32, %c0_i32_0 : i32, i32
  }
  func.func @transform_4(%arg0: i32) -> (i32, i32) {
    %c0_i32 = arith.constant 0 : i32
    %c0_i32_0 = arith.constant 0 : i32
    %c0_i32_1 = arith.constant 0 : i32
    return %c0_i32, %c0_i32_0 : i32, i32
  }
  func.func @transform_5(%arg0: i32) -> (i32, i32) {
    %c0_i32 = arith.constant 0 : i32
    %c0_i32_0 = arith.constant 0 : i32
    %c0_i32_1 = arith.constant 0 : i32
    return %c0_i32, %c0_i32_0 : i32, i32
  }
  func.func @transform_6(%arg0: i32) -> (i32, i32) {
    %c0_i32 = arith.constant 0 : i32
    %c0_i32_0 = arith.constant 0 : i32
    %c0_i32_1 = arith.constant 0 : i32
    return %c0_i32, %c0_i32_0 : i32, i32
  }
  func.func @transform_7(%arg0: i32) -> (i32, i32) {
    %c0_i32 = arith.constant 0 : i32
    %c0_i32_0 = arith.constant 0 : i32
    return %arg0, %c0_i32 : i32, i32
  }
}

</mosaic_0001>

<llo_original>
// kernel: actor_forward.1
$region0: #{actor_forward.1}
  #allocation0 [shape = 'u32[]', space=smem, size = 0x4, offset = 0x4, fixed_abs, tag = 'smem constant byte address 0x4 - core index']
  #allocation1 [shape = 'u32[144,128]{1,0:T(1,128)}', space=vmem, size = 0x12000, scoped, tag = 'internal scratch']
  %s0 = inlined_call_operand.vmem [shape: f32[64,16], index: 0, kind: input, shape index: {}]
  %s1 = inlined_call_operand.vmem [shape: bf16[16,128], index: 1, kind: input, shape index: {}]
  %s2 = inlined_call_operand.vmem [shape: f32[1,128], index: 2, kind: input, shape index: {}]
  %s3 = inlined_call_operand.vmem [shape: bf16[128,128], index: 3, kind: input, shape index: {}]
  %s4 = inlined_call_operand.vmem [shape: f32[1,128], index: 4, kind: input, shape index: {}]
  %s5 = inlined_call_operand.hbm [shape: bf16[128,128], index: 5, kind: input, shape index: {}]
  %s6 = inlined_call_operand.vmem [shape: f32[1,128], index: 6, kind: input, shape index: {}]
  %s7 = inlined_call_operand.vmem [shape: f32[64,8], index: 7, kind: output, shape index: {}]
  %s8 = sld [smem:[#allocation0]]
  $region42: #{actor_forward.1} parent=0
    _
  %s10 = ssub.s32 1, %s8
  %s11 = scalar_select 0, %s10, %s8
  $region1: #{actor_forward.1} parent=0
    #allocation2 [shape = 'u8[32768]{0}', space=vmem, size = 0x8000, scoped, tag = 'input window, operand 5, single buffered']
    #allocation3 [shape = 's32[1]{0}', space=sflag, size = 0x4, scoped, tag = 'scoped memory for actor_forward.1']
    %12 = vsyncpa [#allocation3], 0
    // Predicated region
    $region2: #{actor_forward.1} parent=1 // pred_check
      _
    $region3: #{actor_forward.1} parent=1 // pred_check_branch
      %14 = sbr.rel (0) target = $region5
    $region4: #{actor_forward.1} parent=1 // pred_region
      _
    $region5: #{actor_forward.1} parent=1 // pred_fallthru
      _
    // Predicated region
    $region6: #{actor_forward.1} parent=1 // pred_check
      _
    $region7: #{actor_forward.1} parent=1 // pred_check_branch
      %16 = sbr.rel (0) target = $region9
    $region8: #{actor_forward.1} parent=1 // pred_region
      _
    $region9: #{actor_forward.1} parent=1 // pred_fallthru
      _
    // Predicated region
    $region10: #{actor_forward.1} parent=1 // pred_check
      _
    $region11: #{actor_forward.1} parent=1 // pred_check_branch
      %18 = sbr.rel (0) target = $region13
    $region12: #{actor_forward.1} parent=1 // pred_region
      _
    $region13: #{actor_forward.1} parent=1 // pred_fallthru
      _
    // Predicated region
    $region14: #{actor_forward.1} parent=1 // pred_check
      _
    $region15: #{actor_forward.1} parent=1 // pred_check_branch
      %20 = sbr.rel (0) target = $region17
    $region16: #{actor_forward.1} parent=1 // pred_region
      _
    $region17: #{actor_forward.1} parent=1 // pred_fallthru
      _
    // Predicated region
    $region18: #{actor_forward.1} parent=1 // pred_check
      _
    $region19: #{actor_forward.1} parent=1 // pred_check_branch
      %22 = sbr.rel (0) target = $region21
    $region20: #{actor_forward.1} parent=1 // pred_region
      _
    $region21: #{actor_forward.1} parent=1 // pred_fallthru
      _
    // Predicated region
    $region22: #{actor_forward.1} parent=1 // pred_check
      _
    $region23: #{actor_forward.1} parent=1 // pred_check_branch
      %24 = sbr.rel (0) target = $region25
    $region24: #{actor_forward.1} parent=1 // pred_region
      %s26 = ssub.s32 1024, 1024
      %27 = vsyncadd [#allocation3], %s26
      %s28 = sshll.u32 [#allocation2], 4
      %s29 = int_to_ptr.vmem [resolvable:$true] %s28
      %34 = dma.hbm_to_vmem [thread:$0]  %s5, 1024, %s29, [#allocation3], 64, 64, 4
    $region25: #{actor_forward.1} parent=1 // pred_fallthru
      _
    // Predicated region
    $region26: #{actor_forward.1} parent=1 // pred_check
      _
    $region27: #{actor_forward.1} parent=1 // pred_check_branch
      %36 = sbr.rel (0) target = $region29
    $region28: #{actor_forward.1} parent=1 // pred_region
      _
    $region29: #{actor_forward.1} parent=1 // pred_fallthru
      _
    // Predicated region
    $region30: #{actor_forward.1} parent=1 // pred_check
      _
    $region31: #{actor_forward.1} parent=1 // pred_check_branch
      %38 = sbr.rel (0) target = $region33
    $region32: #{actor_forward.1} parent=1 // pred_region
      %39 = dma.done [#allocation3], 1024
    $region33: #{actor_forward.1} parent=1 // pred_fallthru
      _
    %v41 = vld [vmem:[%s0] sm:$0xff]
    %v42 = vld [vmem:[%s0 + $0x8] sm:$0xff]
    %v43 = vld [vmem:[%s0 + $0x10] sm:$0xff]
    %v44 = vld [vmem:[%s0 + $0x18] sm:$0xff]
    %v45 = vld [vmem:[%s0 + $0x20] sm:$0xff]
    %v46 = vld [vmem:[%s0 + $0x28] sm:$0xff]
    %v47 = vld [vmem:[%s0 + $0x30] sm:$0xff]
    %v48 = vld [vmem:[%s0 + $0x38] sm:$0xff]
    %v49 = vpack.c.bf16 %v42, %v41
    %v50 = vpack.c.bf16 %v44, %v43
    %v51 = vpack.c.bf16 %v46, %v45
    %v52 = vpack.c.bf16 %v48, %v47
    %v53 = vld [vmem:[%s1] sm:$0xf]
    %v54 = vld [vmem:[%s1 + $0x4] sm:$0xf]
    %v55 = vld [vmem:[%s2] sm:$0x1]
    %v57 = vlaneseq
    %v58 = vshrl.u32 %v57, 7
    %v59 = vsub.s32 0, %v58
    %v60 = vrot.slane %v55, %v59
    %v64 = vunpack.c.l.b16 %v53
    %v65 = vunpack.c.l.b16 %v54
    %v66 = vpack.c.b16 %v65, %v64
    %vm68 = vcmask 130048
    %v70 = vsel %vm68, %v49, 0
    %v73 = vsel %vm68, %v50, 0
    %v76 = vsel %vm68, %v51, 0
    %v79 = vsel %vm68, %v52, 0
    %81 = vmatprep.subr.bf16.mxu0 0
    %82 = vmatpush1.bf16.msra.mxu0 0
    %83 = vmatprep.subr.bf16.mxu0 0
    %84 = vmatpush1.bf16.msra.mxu0 0
    %85 = vmatprep.subr.bf16.mxu0 0
    %86 = vmatpush1.bf16.msra.mxu0 0
    %87 = vmatprep.subr.bf16.mxu0 0
    %88 = vmatpush1.bf16.msra.mxu0 0
    %89 = vmatprep.subr.bf16.mxu0 0
    %90 = vmatpush1.bf16.msra.mxu0 0
    %91 = vmatprep.subr.bf16.mxu0 0
    %92 = vmatpush1.bf16.msra.mxu0 0
    %93 = vmatprep.subr.bf16.mxu0 0
    %94 = vmatpush1.bf16.msra.mxu0 0
    %95 = vmatprep.subr.bf16.mxu0 0
    %96 = vmatpush1.bf16.msra.mxu0 %v66
    %97 = vmatprep.subr.bf16.mxu0 0
    %98 = vmatpush2.bf16.msra.mxu0 0
    %99 = vmatprep.subr.bf16.mxu0 0
    %100 = vmatpush2.bf16.msra.mxu0 0
    %101 = vmatprep.subr.bf16.mxu0 0
    %102 = vmatpush2.bf16.msra.mxu0 0
    %103 = vmatprep.subr.bf16.mxu0 0
    %104 = vmatpush2.bf16.msra.mxu0 0
    %105 = vmatprep.subr.bf16.mxu0 0
    %106 = vmatpush2.bf16.msra.mxu0 0
    %107 = vmatprep.subr.bf16.mxu0 0
    %108 = vmatpush2.bf16.msra.mxu0 0
    %109 = vmatprep.subr.bf16.mxu0 0
    %110 = vmatpush2.bf16.msra.mxu0 0
    %111 = vmatprep.subr.bf16.mxu0 0
    %112 = vmatpush2.bf16.msra.mxu0 0
    %113 = vmatprep.mubr.bf16.mxu0 0
    %114 = vmatmul.mubr.bf16.gmra.mxu0 %v70
    %v115 = vpop.f32.mrf.mxu0
    %v116 = vadd.f32 %v60, %v115
    %v117 = vpop.f32.mrf.mxu0
    %v118 = vpop.f32.mrf.mxu0
    %v119 = vadd.f32 %v60, %v118
    %v120 = vpop.f32.mrf.mxu0
    %121 = vmatprep.mubr.bf16.mxu0 0
    %122 = vmatmul.mubr.bf16.gmra.mxu0 %v73
    %v123 = vpop.f32.mrf.mxu0
    %v124 = vadd.f32 %v60, %v123
    %v125 = vpop.f32.mrf.mxu0
    %v126 = vpop.f32.mrf.mxu0
    %v127 = vadd.f32 %v60, %v126
    %v128 = vpop.f32.mrf.mxu0
    %129 = vmatprep.mubr.bf16.mxu0 0
    %130 = vmatmul.mubr.bf16.gmra.mxu0 %v76
    %v131 = vpop.f32.mrf.mxu0
    %v132 = vadd.f32 %v60, %v131
    %v133 = vpop.f32.mrf.mxu0
    %v134 = vpop.f32.mrf.mxu0
    %v135 = vadd.f32 %v60, %v134
    %v136 = vpop.f32.mrf.mxu0
    %137 = vmatprep.mubr.bf16.mxu0 0
    %138 = vmatmul.mubr.bf16.gmra.mxu0 %v79
    %v139 = vpop.f32.mrf.mxu0
    %v140 = vadd.f32 %v60, %v139
    %v141 = vpop.f32.mrf.mxu0
    %v142 = vpop.f32.mrf.mxu0
    %v143 = vadd.f32 %v60, %v142
    %v144 = vpop.f32.mrf.mxu0
    %145 = vdwg.mxu0
    %v146 = vpack.c.bf16 %v119, %v116
    %v147 = vpack.c.bf16 %v127, %v124
    %v148 = vpack.c.bf16 %v135, %v132
    %v149 = vpack.c.bf16 %v143, %v140
    %v150 = vtanh.bf16.pop %v146
    %v151 = vtanh.bf16.pop %v147
    %v152 = vtanh.bf16.pop %v148
    %v153 = vtanh.bf16.pop %v149
    %v154 = vld [vmem:[%s3] sm:$0xf]
    %v155 = vld [vmem:[%s3 + $0x4] sm:$0xf]
    %v156 = vld [vmem:[%s3 + $0x8] sm:$0xf]
    %v157 = vld [vmem:[%s3 + $0xc] sm:$0xf]
    %v158 = vld [vmem:[%s3 + $0x10] sm:$0xf]
    %v159 = vld [vmem:[%s3 + $0x14] sm:$0xf]
    %v160 = vld [vmem:[%s3 + $0x18] sm:$0xf]
    %v161 = vld [vmem:[%s3 + $0x1c] sm:$0xf]
    %v162 = vld [vmem:[%s3 + $0x20] sm:$0xf]
    %v163 = vld [vmem:[%s3 + $0x24] sm:$0xf]
    %v164 = vld [vmem:[%s3 + $0x28] sm:$0xf]
    %v165 = vld [vmem:[%s3 + $0x2c] sm:$0xf]
    %v166 = vld [vmem:[%s3 + $0x30] sm:$0xf]
    %v167 = vld [vmem:[%s3 + $0x34] sm:$0xf]
    %v168 = vld [vmem:[%s3 + $0x38] sm:$0xf]
    %v169 = vld [vmem:[%s3 + $0x3c] sm:$0xf]
    %v170 = vld [vmem:[%s4] sm:$0x1]
    %v172 = vlaneseq
    %v173 = vshrl.u32 %v172, 7
    %v174 = vsub.s32 0, %v173
    %v175 = vrot.slane %v170, %v174
    %v193 = vunpack.c.l.b16 %v154
    %v194 = vunpack.c.l.b16 %v155
    %v195 = vunpack.c.l.b16 %v156
    %v196 = vunpack.c.l.b16 %v157
    %v197 = vunpack.c.l.b16 %v158
    %v198 = vunpack.c.l.b16 %v159
    %v199 = vunpack.c.l.b16 %v160
    %v200 = vunpack.c.l.b16 %v161
    %v201 = vunpack.c.l.b16 %v162
    %v202 = vunpack.c.l.b16 %v163
    %v203 = vunpack.c.l.b16 %v164
    %v204 = vunpack.c.l.b16 %v165
    %v205 = vunpack.c.l.b16 %v166
    %v206 = vunpack.c.l.b16 %v167
    %v207 = vunpack.c.l.b16 %v168
    %v208 = vunpack.c.l.b16 %v169
    %v209 = vpack.c.b16 %v194, %v193
    %v210 = vpack.c.b16 %v196, %v195
    %v211 = vpack.c.b16 %v198, %v197
    %v212 = vpack.c.b16 %v200, %v199
    %v213 = vpack.c.b16 %v202, %v201
    %v214 = vpack.c.b16 %v204, %v203
    %v215 = vpack.c.b16 %v206, %v205
    %v216 = vpack.c.b16 %v208, %v207
    %225 = vmatprep.subr.bf16.mxu0 0
    %226 = vmatpush1.bf16.msra.mxu0 %v216
    %227 = vmatprep.subr.bf16.mxu0 0
    %228 = vmatpush1.bf16.msra.mxu0 %v215
    %229 = vmatprep.subr.bf16.mxu0 0
    %230 = vmatpush1.bf16.msra.mxu0 %v214
    %231 = vmatprep.subr.bf16.mxu0 0
    %232 = vmatpush1.bf16.msra.mxu0 %v213
    %233 = vmatprep.subr.bf16.mxu0 0
    %234 = vmatpush1.bf16.msra.mxu0 %v212
    %235 = vmatprep.subr.bf16.mxu0 0
    %236 = vmatpush1.bf16.msra.mxu0 %v211
    %237 = vmatprep.subr.bf16.mxu0 0
    %238 = vmatpush1.bf16.msra.mxu0 %v210
    %239 = vmatprep.subr.bf16.mxu0 0
    %240 = vmatpush1.bf16.msra.mxu0 %v209
    %241 = vmatprep.subr.bf16.mxu0 0
    %242 = vmatpush2.bf16.msra.mxu0 0
    %243 = vmatprep.subr.bf16.mxu0 0
    %244 = vmatpush2.bf16.msra.mxu0 0
    %245 = vmatprep.subr.bf16.mxu0 0
    %246 = vmatpush2.bf16.msra.mxu0 0
    %247 = vmatprep.subr.bf16.mxu0 0
    %248 = vmatpush2.bf16.msra.mxu0 0
    %249 = vmatprep.subr.bf16.mxu0 0
    %250 = vmatpush2.bf16.msra.mxu0 0
    %251 = vmatprep.subr.bf16.mxu0 0
    %252 = vmatpush2.bf16.msra.mxu0 0
    %253 = vmatprep.subr.bf16.mxu0 0
    %254 = vmatpush2.bf16.msra.mxu0 0
    %255 = vmatprep.subr.bf16.mxu0 0
    %256 = vmatpush2.bf16.msra.mxu0 0
    %257 = vmatprep.mubr.bf16.mxu0 0
    %258 = vmatmul.mubr.bf16.gmra.mxu0 %v150
    %v259 = vpop.f32.mrf.mxu0
    %v260 = vadd.f32 %v175, %v259
    %v261 = vpop.f32.mrf.mxu0
    %v262 = vpop.f32.mrf.mxu0
    %v263 = vadd.f32 %v175, %v262
    %v264 = vpop.f32.mrf.mxu0
    %265 = vmatprep.mubr.bf16.mxu0 0
    %266 = vmatmul.mubr.bf16.gmra.mxu0 %v151
    %v267 = vpop.f32.mrf.mxu0
    %v268 = vadd.f32 %v175, %v267
    %v269 = vpop.f32.mrf.mxu0
    %v270 = vpop.f32.mrf.mxu0
    %v271 = vadd.f32 %v175, %v270
    %v272 = vpop.f32.mrf.mxu0
    %273 = vmatprep.mubr.bf16.mxu0 0
    %274 = vmatmul.mubr.bf16.gmra.mxu0 %v152
    %v275 = vpop.f32.mrf.mxu0
    %v276 = vadd.f32 %v175, %v275
    %v277 = vpop.f32.mrf.mxu0
    %v278 = vpop.f32.mrf.mxu0
    %v279 = vadd.f32 %v175, %v278
    %v280 = vpop.f32.mrf.mxu0
    %281 = vmatprep.mubr.bf16.mxu0 0
    %282 = vmatmul.mubr.bf16.gmra.mxu0 %v153
    %v283 = vpop.f32.mrf.mxu0
    %v284 = vadd.f32 %v175, %v283
    %v285 = vpop.f32.mrf.mxu0
    %v286 = vpop.f32.mrf.mxu0
    %v287 = vadd.f32 %v175, %v286
    %v288 = vpop.f32.mrf.mxu0
    %289 = vdwg.mxu0
    %v290 = vpack.c.bf16 %v263, %v260
    %v291 = vpack.c.bf16 %v271, %v268
    %v292 = vpack.c.bf16 %v279, %v276
    %v293 = vpack.c.bf16 %v287, %v284
    %v294 = vtanh.bf16.pop %v290
    %v295 = vtanh.bf16.pop %v291
    %v296 = vtanh.bf16.pop %v292
    %v297 = vtanh.bf16.pop %v293
    %v298 = vld [vmem:[#allocation2] sm:$0xf]
    %v299 = vld [vmem:[#allocation2 + $0x4] sm:$0xf]
    %v300 = vld [vmem:[#allocation2 + $0x8] sm:$0xf]
    %v301 = vld [vmem:[#allocation2 + $0xc] sm:$0xf]
    %v302 = vld [vmem:[#allocation2 + $0x10] sm:$0xf]
    %v303 = vld [vmem:[#allocation2 + $0x14] sm:$0xf]
    %v304 = vld [vmem:[#allocation2 + $0x18] sm:$0xf]
    %v305 = vld [vmem:[#allocation2 + $0x1c] sm:$0xf]
    %v306 = vld [vmem:[#allocation2 + $0x20] sm:$0xf]
    %v307 = vld [vmem:[#allocation2 + $0x24] sm:$0xf]
    %v308 = vld [vmem:[#allocation2 + $0x28] sm:$0xf]
    %v309 = vld [vmem:[#allocation2 + $0x2c] sm:$0xf]
    %v310 = vld [vmem:[#allocation2 + $0x30] sm:$0xf]
    %v311 = vld [vmem:[#allocation2 + $0x34] sm:$0xf]
    %v312 = vld [vmem:[#allocation2 + $0x38] sm:$0xf]
    %v313 = vld [vmem:[#allocation2 + $0x3c] sm:$0xf]
    %v314 = vld [vmem:[%s6] sm:$0x1]
    %v316 = vlaneseq
    %v317 = vshrl.u32 %v316, 7
    %v318 = vsub.s32 0, %v317
    %v319 = vrot.slane %v314, %v318
    %v337 = vunpack.c.l.b16 %v298
    %v338 = vunpack.c.l.b16 %v299
    %v339 = vunpack.c.l.b16 %v300
    %v340 = vunpack.c.l.b16 %v301
    %v341 = vunpack.c.l.b16 %v302
    %v342 = vunpack.c.l.b16 %v303
    %v343 = vunpack.c.l.b16 %v304
    %v344 = vunpack.c.l.b16 %v305
    %v345 = vunpack.c.l.b16 %v306
    %v346 = vunpack.c.l.b16 %v307
    %v347 = vunpack.c.l.b16 %v308
    %v348 = vunpack.c.l.b16 %v309
    %v349 = vunpack.c.l.b16 %v310
    %v350 = vunpack.c.l.b16 %v311
    %v351 = vunpack.c.l.b16 %v312
    %v352 = vunpack.c.l.b16 %v313
    %v353 = vpack.c.b16 %v338, %v337
    %v354 = vpack.c.b16 %v340, %v339
    %v355 = vpack.c.b16 %v342, %v341
    %v356 = vpack.c.b16 %v344, %v343
    %v357 = vpack.c.b16 %v346, %v345
    %v358 = vpack.c.b16 %v348, %v347
    %v359 = vpack.c.b16 %v350, %v349
    %v360 = vpack.c.b16 %v352, %v351
    %369 = vmatprep.subr.bf16.mxu0 0
    %370 = vmatpush1.bf16.msra.mxu0 %v360
    %371 = vmatprep.subr.bf16.mxu0 0
    %372 = vmatpush1.bf16.msra.mxu0 %v359
    %373 = vmatprep.subr.bf16.mxu0 0
    %374 = vmatpush1.bf16.msra.mxu0 %v358
    %375 = vmatprep.subr.bf16.mxu0 0
    %376 = vmatpush1.bf16.msra.mxu0 %v357
    %377 = vmatprep.subr.bf16.mxu0 0
    %378 = vmatpush1.bf16.msra.mxu0 %v356
    %379 = vmatprep.subr.bf16.mxu0 0
    %380 = vmatpush1.bf16.msra.mxu0 %v355
    %381 = vmatprep.subr.bf16.mxu0 0
    %382 = vmatpush1.bf16.msra.mxu0 %v354
    %383 = vmatprep.subr.bf16.mxu0 0
    %384 = vmatpush1.bf16.msra.mxu0 %v353
    %385 = vmatprep.subr.bf16.mxu0 0
    %386 = vmatpush2.bf16.msra.mxu0 0
    %387 = vmatprep.subr.bf16.mxu0 0
    %388 = vmatpush2.bf16.msra.mxu0 0
    %389 = vmatprep.subr.bf16.mxu0 0
    %390 = vmatpush2.bf16.msra.mxu0 0
    %391 = vmatprep.subr.bf16.mxu0 0
    %392 = vmatpush2.bf16.msra.mxu0 0
    %393 = vmatprep.subr.bf16.mxu0 0
    %394 = vmatpush2.bf16.msra.mxu0 0
    %395 = vmatprep.subr.bf16.mxu0 0
    %396 = vmatpush2.bf16.msra.mxu0 0
    %397 = vmatprep.subr.bf16.mxu0 0
    %398 = vmatpush2.bf16.msra.mxu0 0
    %399 = vmatprep.subr.bf16.mxu0 0
    %400 = vmatpush2.bf16.msra.mxu0 0
    %401 = vmatprep.mubr.bf16.mxu0 0
    %402 = vmatmul.mubr.bf16.gmra.mxu0 %v294
    %v403 = vpop.f32.mrf.mxu0
    %v404 = vadd.f32 %v319, %v403
    %v405 = vpop.f32.mrf.mxu0
    %v406 = vpop.f32.mrf.mxu0
    %v407 = vadd.f32 %v319, %v406
    %v408 = vpop.f32.mrf.mxu0
    %409 = vmatprep.mubr.bf16.mxu0 0
    %410 = vmatmul.mubr.bf16.gmra.mxu0 %v295
    %v411 = vpop.f32.mrf.mxu0
    %v412 = vadd.f32 %v319, %v411
    %v413 = vpop.f32.mrf.mxu0
    %v414 = vpop.f32.mrf.mxu0
    %v415 = vadd.f32 %v319, %v414
    %v416 = vpop.f32.mrf.mxu0
    %417 = vmatprep.mubr.bf16.mxu0 0
    %418 = vmatmul.mubr.bf16.gmra.mxu0 %v296
    %v419 = vpop.f32.mrf.mxu0
    %v420 = vadd.f32 %v319, %v419
    %v421 = vpop.f32.mrf.mxu0
    %v422 = vpop.f32.mrf.mxu0
    %v423 = vadd.f32 %v319, %v422
    %v424 = vpop.f32.mrf.mxu0
    %425 = vmatprep.mubr.bf16.mxu0 0
    %426 = vmatmul.mubr.bf16.gmra.mxu0 %v297
    %v427 = vpop.f32.mrf.mxu0
    %v428 = vadd.f32 %v319, %v427
    %v429 = vpop.f32.mrf.mxu0
    %v430 = vpop.f32.mrf.mxu0
    %v431 = vadd.f32 %v319, %v430
    %v432 = vpop.f32.mrf.mxu0
    %433 = vdwg.mxu0
    %vm434 = vcmask 64512
    %435 = vst.msk [vmem:[%s7] sm:$0xff] %vm434, %v404
    %436 = vst.msk [vmem:[%s7 + $0x8] sm:$0xff] %vm434, %v407
    %437 = vst.msk [vmem:[%s7 + $0x10] sm:$0xff] %vm434, %v412
    %438 = vst.msk [vmem:[%s7 + $0x18] sm:$0xff] %vm434, %v415
    %439 = vst.msk [vmem:[%s7 + $0x20] sm:$0xff] %vm434, %v420
    %440 = vst.msk [vmem:[%s7 + $0x28] sm:$0xff] %vm434, %v423
    %441 = vst.msk [vmem:[%s7 + $0x30] sm:$0xff] %vm434, %v428
    %442 = vst.msk [vmem:[%s7 + $0x38] sm:$0xff] %vm434, %v431
    // Predicated region
    $region34: #{actor_forward.1} parent=1 // pred_check
      _
    $region35: #{actor_forward.1} parent=1 // pred_check_branch
      %444 = sbr.rel (0) target = $region37
    $region36: #{actor_forward.1} parent=1 // pred_region
      _
    $region37: #{actor_forward.1} parent=1 // pred_fallthru
      _
    // Predicated region
    $region38: #{actor_forward.1} parent=1 // pred_check
      _
    $region39: #{actor_forward.1} parent=1 // pred_check_branch
      %446 = sbr.rel (0) target = $region41
    $region40: #{actor_forward.1} parent=1 // pred_region
      _
    $region41: #{actor_forward.1} parent=1 // pred_fallthru
      _
    %447 = vsyncpa [#allocation3], 1

</llo_original>
